<compile_context>
chip_gen: v6e
topology: v6e:2x2x1
jax: 0.10.0
libtpu: 0.0.40
codegen_flags: <defaults>
</compile_context>

<pallas_src>
import functools

import jax
import jax.numpy as jnp
from jax.experimental import pallas as pl
from jax.experimental.pallas import tpu as pltpu


# ---------------------------------------------------------------------------
# Parameter setup (matches the PyTorch __init__ exactly, in float32)
# ---------------------------------------------------------------------------
def make_positional_encoding(pad_size: int, embed: int) -> jnp.ndarray:
    pos = jnp.arange(pad_size, dtype=jnp.float32)[:, None]          # [S, 1]
    i = jnp.arange(embed, dtype=jnp.float32)[None, :]                # [1, E]
    div = jnp.power(10000.0, jnp.floor(i / 2.0) * 2.0 / embed)       # [1, E]
    angles = pos / div                                               # [S, E]
    pe = jnp.where((jnp.arange(embed) % 2) == 0,
                   jnp.sin(angles), jnp.cos(angles))
    return pe.astype(jnp.float32)


# ---------------------------------------------------------------------------
# Kernels
# ---------------------------------------------------------------------------
def _pe_add_kernel(x_ref, pe_ref, o_ref):
    # x_ref: (TR, TC) rows of the flattened batch, pe_ref: (1, TC) broadcast
    # over rows. Plain sublane broadcast + add; no [None, :, :] reshape.
    o_ref[...] = x_ref[...] + pe_ref[...]


def _mix32(x):
    # splitmix32-style finalizer: a handful of integer VALU ops per vreg.
    x = x ^ (x >> 16)
    x = x * jnp.uint32(0x7FEB352D)
    x = x ^ (x >> 15)
    x = x * jnp.uint32(0x846CA68B)
    x = x ^ (x >> 16)
    return x


def _pe_add_dropout_kernel(seed_ref, x_ref, pe_ref, o_ref, *,
                           keep_threshold, inv_keep, tile_r, tile_c, n_cols):
    # Inverted dropout: keep with prob keep_prob, scale kept values 1/keep_prob.
    out = x_ref[...] + pe_ref[...]
    shape = out.shape  # (tile_r, tile_c)

    # Global element index -> counter-based hash -> unsigned threshold compare.
    row = (jax.lax.broadcasted_iota(jnp.int32, shape, 0)
           + pl.program_id(0) * tile_r).astype(jnp.uint32)
    col = (jax.lax.broadcasted_iota(jnp.int32, shape, 1)
           + pl.program_id(1) * tile_c).astype(jnp.uint32)
    idx = row * jnp.uint32(n_cols) + col

    # Multiplicative seed mix (decorrelates streams for nearby seeds).
    seed_u = seed_ref[0].astype(jnp.uint32) * jnp.uint32(0x9E3779B9)
    bits = _mix32(idx ^ seed_u)

    keep = bits < jnp.uint32(keep_threshold)     # single integer compare
    o_ref[...] = jnp.where(keep, out * inv_keep, 0.0).astype(o_ref.dtype)


# ---------------------------------------------------------------------------
# Wrapper
# ---------------------------------------------------------------------------
_ROW_TILE_TARGET = 256    # sublane-dim tile target (rows of the batch)
_COL_TILE_TARGET = 2048   # lane-dim tile target (>= 512 lanes, lane-dense)
# 256 x 2048 f32 = 2 MiB per block; double-buffered x + out + resident pe
# stays ~8-9 MiB, safely inside v5e (16 MiB) / v6e (32 MiB) / v7x (32 MiB)
# scoped-VMEM defaults while sitting at the measured tile-size sweet spot.


def _pick_tile(dim, target, align):
    """Largest `align`-multiple tile <= target; or the full dim when the dim
    is small / not alignable (block dims must be multiples of (8, 128) or
    equal the full array dim)."""
    if dim <= target or dim % align != 0:
        return dim
    return (target // align) * align


def positional_encoding_forward(x, pe, *, dropout_p=0.0, training=False, seed=0):
    """x: [B, S, E] float32, pe: [S, E] float32 -> [B, S, E].

    Equivalent to the PyTorch module forward: out = dropout(x + pe).
    """
    B, S, E = x.shape
    assert pe.shape == (S, E)
    N = S * E

    # Lane-dense layout: fold (S, E) into one trailing axis (free reshape).
    x2 = x.reshape(B, N)
    pe2 = pe.reshape(1, N)

    tr = _pick_tile(B, _ROW_TILE_TARGET, 8)
    tc = _pick_tile(N, _COL_TILE_TARGET, 128)
    grid = (pl.cdiv(B, tr), pl.cdiv(N, tc))

    if training and dropout_p > 0.0:
        keep_prob = 1.0 - float(dropout_p)
        keep_threshold = min(int(round(keep_prob * 4294967296.0)), 4294967295)
        kernel = functools.partial(
            _pe_add_dropout_kernel,
            keep_threshold=keep_threshold,
            inv_keep=1.0 / keep_prob,
            tile_r=tr, tile_c=tc, n_cols=N)
        seed_arr = jnp.asarray([seed], dtype=jnp.int32)
        out2 = pl.pallas_call(
            kernel,
            out_shape=jax.ShapeDtypeStruct((B, N), x.dtype),
            grid_spec=pltpu.PrefetchScalarGridSpec(
                num_scalar_prefetch=1,
                grid=grid,
                in_specs=[
                    pl.BlockSpec((tr, tc), lambda i, j, s: (i, j)),
                    pl.BlockSpec((1, tc), lambda i, j, s: (0, j)),
                ],
                out_specs=pl.BlockSpec((tr, tc), lambda i, j, s: (i, j)),
            ),
            compiler_params=pltpu.CompilerParams(
                dimension_semantics=("parallel", "parallel")),
        )(seed_arr, x2, pe2)
    else:
        # Eval path (dropout is identity) — matches module.eval() semantics.
        out2 = pl.pallas_call(
            _pe_add_kernel,
            out_shape=jax.ShapeDtypeStruct((B, N), x.dtype),
            grid=grid,
            in_specs=[
                pl.BlockSpec((tr, tc), lambda i, j: (i, j)),
                pl.BlockSpec((1, tc), lambda i, j: (0, j)),
            ],
            out_specs=pl.BlockSpec((tr, tc), lambda i, j: (i, j)),
            compiler_params=pltpu.CompilerParams(
                dimension_semantics=("parallel", "parallel")),
        )(x2, pe2)

    return out2.reshape(B, S, E)


# ---------------------------------------------------------------------------
# Demo / correctness check
# ---------------------------------------------------------------------------
if __name__ == "__main__":
    batch, pad_size, embed = 2, 8, 32
    dropout_p = 0.1

    key = jax.random.PRNGKey(0)
    x = jax.random.normal(key, (batch, pad_size, embed), dtype=jnp.float32)
    pe = make_positional_encoding(pad_size, embed)

    # Eval-mode forward (deterministic): out = x + pe
    out = positional_encoding_forward(x, pe, dropout_p=dropout_p, training=False)
    out = jax.block_until_ready(out)
    ref = x + pe[None, :, :]
    assert out.shape == (batch, pad_size, embed)
    assert jnp.allclose(out, ref, atol=1e-6, rtol=1e-6)

    # Training-mode forward: inverted dropout of (x + pe) inside the kernel.
    out_train = positional_encoding_forward(
        x, pe, dropout_p=dropout_p, training=True, seed=1234)
    out_train = jax.block_until_ready(out_train)
    assert out_train.shape == (batch, pad_size, embed)
    # Every output element is either dropped (0) or ref / keep_prob.
    keep_prob = 1.0 - dropout_p
    kept = out_train != 0.0
    assert jnp.allclose(jnp.where(kept, out_train * keep_prob, 0.0),
                        jnp.where(kept, ref, 0.0), atol=1e-5, rtol=1e-5)

    print("KERNEL_OK")
</pallas_src>

<mosaic_0001>
module attributes {stable_mosaic.version = 11 : i64} {
  func.func @_pe_add_kernel(%arg0: i32, %arg1: i32, %arg2: memref<2x256xf32, #tpu.memory_space<vmem>>, %arg3: memref<1x256xf32, #tpu.memory_space<vmem>>, %arg4: memref<2x256xf32, #tpu.memory_space<vmem>>) attributes {dimension_semantics = [#tpu.dimension_semantics<parallel>, #tpu.dimension_semantics<parallel>], iteration_bounds = array<i64: 1, 1>, scalar_prefetch = 0 : i64, scratch_operands = 0 : i64, tpu.core_type = #tpu.core_type<tc>, window_params = [{transform_indices = @transform_0, window_bounds = array<i64: 2, 256>}, {transform_indices = @transform_1, window_bounds = array<i64: 1, 256>}, {transform_indices = @transform_2, window_bounds = array<i64: 2, 256>}]} {
    %c0 = arith.constant 0 : index
    %c0_0 = arith.constant 0 : index
    %0 = vector.load %arg2[%c0, %c0_0] : memref<2x256xf32, #tpu.memory_space<vmem>>, vector<2x256xf32>
    %c0_1 = arith.constant 0 : index
    %c0_2 = arith.constant 0 : index
    %1 = vector.load %arg3[%c0_1, %c0_2] : memref<1x256xf32, #tpu.memory_space<vmem>>, vector<1x256xf32>
    %2 = vector.broadcast %1 : vector<1x256xf32> to vector<2x256xf32>
    %3 = arith.addf %0, %2 : vector<2x256xf32>
    %c0_3 = arith.constant 0 : index
    %c0_4 = arith.constant 0 : index
    %4 = vector.load %arg4[%c0_3, %c0_4] : memref<2x256xf32, #tpu.memory_space<vmem>>, vector<2x256xf32>
    tpu.vector_store %arg4[%c0_3, %c0_4], %3 {strides = array<i32>} : memref<2x256xf32, #tpu.memory_space<vmem>>, vector<2x256xf32>,
    return
  }
  func.func @transform_0(%arg0: i32, %arg1: i32) -> (i32, i32) {
    %c0_i32 = arith.constant 0 : i32
    return %arg0, %arg1 : i32, i32
  }
  func.func @transform_1(%arg0: i32, %arg1: i32) -> (i32, i32) {
    %c0_i32 = arith.constant 0 : i32
    %c0_i32_0 = arith.constant 0 : i32
    return %c0_i32, %arg1 : i32, i32
  }
  func.func @transform_2(%arg0: i32, %arg1: i32) -> (i32, i32) {
    %c0_i32 = arith.constant 0 : i32
    return %arg0, %arg1 : i32, i32
  }
}

</mosaic_0001>

<llo_original>
// kernel: tpu_custom_call.1
$region0: #{tpu_custom_call.1}
  #allocation0 [shape = 'u32[]', space=smem, size = 0x4, offset = 0x4, fixed_abs, tag = 'smem constant byte address 0x4 - core index']
  #allocation1 [shape = 'u32[144,128]{1,0:T(1,128)}', space=vmem, size = 0x12000, scoped, tag = 'internal scratch']
  %s0 = inlined_call_operand.hbm [shape: f32[2,256], index: 0, kind: input, shape index: {}]
  %s1 = inlined_call_operand.hbm [shape: f32[1,256], index: 1, kind: input, shape index: {}]
  %s2 = inlined_call_operand.hbm [shape: f32[2,256], index: 2, kind: output, shape index: {}]
  %s3 = sld [smem:[#allocation0]]
  $region26: #{tpu_custom_call.1} parent=0
    _
  %s5 = ssub.s32 1, %s3
  %s6 = scalar_select 0, %s5, %s3
  $region1: #{tpu_custom_call.1} parent=0
    #allocation2 [shape = 'u8[2048]{0}', space=vmem, size = 0x800, scoped, tag = 'input window, operand 0, single buffered']
    #allocation3 [shape = 's32[1]{0}', space=sflag, size = 0x4, scoped, tag = 'scoped memory for tpu_custom_call.1']
    #allocation4 [shape = 's32[1]{0}', space=sflag, size = 0x4, scoped, tag = 'scoped memory for tpu_custom_call.1']
    #allocation5 [shape = 'u8[1024]{0}', space=vmem, size = 0x400, scoped, tag = 'input window, operand 1, single buffered']
    #allocation6 [shape = 's32[1]{0}', space=sflag, size = 0x4, scoped, tag = 'scoped memory for tpu_custom_call.1']
    #allocation7 [shape = 'u8[2048]{0}', space=vmem, size = 0x800, scoped, tag = 'output window, operand 0, single buffered']
    %7 = vsyncpa [#allocation3], 0
    %8 = vsyncpa [#allocation6], 0
    %9 = vsyncpa [#allocation4], 0
    // Predicated region
    $region2: #{tpu_custom_call.1} parent=1 // pred_check
      _
    $region3: #{tpu_custom_call.1} parent=1 // pred_check_branch
      %11 = sbr.rel (0) target = $region5
    $region4: #{tpu_custom_call.1} parent=1 // pred_region
      %s13 = ssub.s32 64, 64
      %14 = vsyncadd [#allocation3], %s13
      %s16 = sshll.u32 [#allocation2], 4
      %s17 = int_to_ptr.vmem [resolvable:$true] %s16
      %19 = dma.hbm_to_vmem [thread:$0]  %s0, 64, %s17, [#allocation3]
    $region5: #{tpu_custom_call.1} parent=1 // pred_fallthru
      _
    // Predicated region
    $region6: #{tpu_custom_call.1} parent=1 // pred_check
      _
    $region7: #{tpu_custom_call.1} parent=1 // pred_check_branch
      %21 = sbr.rel (0) target = $region9
    $region8: #{tpu_custom_call.1} parent=1 // pred_region
      %s23 = ssub.s32 32, 32
      %24 = vsyncadd [#allocation6], %s23
      %s26 = sshll.u32 [#allocation5], 4
      %s27 = int_to_ptr.vmem [resolvable:$true] %s26
      %29 = dma.hbm_to_vmem [thread:$0]  %s1, 32, %s27, [#allocation6]
    $region9: #{tpu_custom_call.1} parent=1 // pred_fallthru
      _
    // Predicated region
    $region10: #{tpu_custom_call.1} parent=1 // pred_check
      _
    $region11: #{tpu_custom_call.1} parent=1 // pred_check_branch
      %31 = sbr.rel (0) target = $region13
    $region12: #{tpu_custom_call.1} parent=1 // pred_region
      %32 = dma.done [#allocation3], 64
    $region13: #{tpu_custom_call.1} parent=1 // pred_fallthru
      _
    // Predicated region
    $region14: #{tpu_custom_call.1} parent=1 // pred_check
      _
    $region15: #{tpu_custom_call.1} parent=1 // pred_check_branch
      %34 = sbr.rel (0) target = $region17
    $region16: #{tpu_custom_call.1} parent=1 // pred_region
      %35 = dma.done [#allocation6], 32
    $region17: #{tpu_custom_call.1} parent=1 // pred_fallthru
      _
    %v36 = vld [vmem:[#allocation2] sm:$0xf]
    %v37 = vld [vmem:[#allocation5] sm:$0x3]
    %v39 = vlaneseq
    %v40 = vshrl.u32 %v39, 7
    %v41 = vsub.s32 0, %v40
    %v42 = vrot.slane %v37, %v41
    %v43 = vlaneseq
    %v44 = vshrl.u32 %v43, 7
    %v45 = vsub.s32 1, %v44
    %v46 = vrot.slane %v37, %v45
    %v47 = vcombine.low %v42, %v46
    %v49 = vunpack.c.l.s4 1983009808
    %v50 = vunpack.c.0.s8 %v49
    %v51 = vlaneseq
    %v52 = vshrl.u32 %v51, 7
    %v53 = vsub.s32 %v50, %v52
    %v54 = vrot.slane %v47, %v53
    %v56 = vadd.f32 %v36, %v54
    %57 = vst [vmem:[#allocation7] sm:$0xf] %v56
    // Predicated region
    $region18: #{tpu_custom_call.1} parent=1 // pred_check
      _
    $region19: #{tpu_custom_call.1} parent=1 // pred_check_branch
      %59 = sbr.rel (0) target = $region21
    $region20: #{tpu_custom_call.1} parent=1 // pred_region
      %s61 = ssub.s32 64, 64
      %62 = vsyncadd [#allocation4], %s61
      %s64 = sshll.u32 [#allocation7], 4
      %s65 = int_to_ptr.vmem [resolvable:$true] %s64
      %67 = dma.vmem_to_hbm [thread:$0]  %s65, 64, %s2, [#allocation4]
    $region21: #{tpu_custom_call.1} parent=1 // pred_fallthru
      _
    // Predicated region
    $region22: #{tpu_custom_call.1} parent=1 // pred_check
      _
    $region23: #{tpu_custom_call.1} parent=1 // pred_check_branch
      %69 = sbr.rel (0) target = $region25
    $region24: #{tpu_custom_call.1} parent=1 // pred_region
      %70 = dma.done [#allocation4], 64
    $region25: #{tpu_custom_call.1} parent=1 // pred_fallthru
      _
    %71 = vsyncpa [#allocation3], 1
    %72 = vsyncpa [#allocation6], 1
    %73 = vsyncpa [#allocation4], 1

</llo_original>
